<compile_context>
chip_gen: v6e
topology: v6e:2x2x1
jax: 0.10.0
libtpu: 0.0.40
codegen_flags: <defaults>
</compile_context>

<pallas_src>
import functools

import jax
import jax.numpy as jnp
import numpy as np
from jax.experimental import pallas as pl
from jax.experimental.pallas import tpu as pltpu


def _wrmse_kernel(x_ref, y_ref, w_ref, o_ref, *, rows, cols, row_tile,
                  lane_tile, row_tail, lane_tail):
    pi = pl.program_id(0)          # parallel slice (TensorCore split on v7x)
    l = pl.program_id(1)           # lane-tile step
    j = pl.program_id(2)           # row-tile step
    nj = pl.num_programs(2)

    @pl.when((l == 0) & (j == 0))
    def _():
        o_ref[...] = jnp.zeros_like(o_ref)

    row0 = (pi * nj + j) * row_tile        # logical (unclamped) first row
    col0 = l * lane_tile                   # logical first lane

    def lane_fold(p8):
        # (8, lane_tile) -> (8, min(lane_tile, 128)) via a pairwise tree of
        # 128-wide static slices: layout-preserving VPU adds only.
        if lane_tile <= 128:
            return p8
        chunks = [p8[:, k * 128:(k + 1) * 128] for k in range(lane_tile // 128)]
        while len(chunks) > 1:
            nxt = [chunks[i] + chunks[i + 1]
                   for i in range(0, len(chunks) - 1, 2)]
            if len(chunks) % 2:
                nxt.append(chunks[-1])
            chunks = nxt
        return chunks[0]

    def accumulate(masked):
        # Upcast inside VMEM so bf16 inputs stream at half the HBM bytes.
        x = x_ref[...].astype(jnp.float32)
        y = y_ref[...].astype(jnp.float32)
        d = x - y
        sq = d * d
        if masked and row_tail:
            # Zero rows past the true end (tail block / idle clamped slice)
            # BEFORE the row fold so padded garbage never reaches the sum.
            rid = jax.lax.broadcasted_iota(jnp.int32, sq.shape, 0) + row0
            sq = jnp.where(rid < rows, sq, 0.0)
        # Row fold: (row_tile, Lt) -> (8, Lt); sublane-split reshape + VPU adds.
        p8 = sq.reshape(row_tile // 8, 8, sq.shape[-1]).sum(axis=0)
        # Weights are constant over rows: multiply once per 8-row group.
        p8 = p8 * w_ref[...]
        if masked and lane_tail:
            # Discard padded lanes (and their padded weights) AFTER the weight
            # multiply so inf/nan garbage cannot leak through via 0*inf.
            cid = jax.lax.broadcasted_iota(jnp.int32, p8.shape, 1) + col0
            p8 = jnp.where(cid < cols, p8, 0.0)
        # Output block is revisited across (l, j) -> VMEM-resident accumulator.
        o_ref[...] += lane_fold(p8)

    if row_tail or lane_tail:
        conds = []
        if row_tail:
            conds.append(row0 + row_tile <= rows)
        if lane_tail:
            conds.append(col0 + lane_tile <= cols)
        full = conds[0]
        for c_ in conds[1:]:
            full = jnp.logical_and(full, c_)

        @pl.when(full)
        def _():
            accumulate(False)          # hot path: no per-element masking

        @pl.when(jnp.logical_not(full))
        def _():
            accumulate(True)
    else:
        accumulate(False)


def weighted_rmse(inputs, targets, weights, *, row_tile=None,
                  target_block_bytes=None, num_cores=None):
    """sqrt(mean((inputs - targets)**2 * weights)) for NCHW inputs.

    `weights` must be broadcastable to (1, 1, H, W) (per-latitude / per-pixel);
    it is streamed as (1, lane_tile) VMEM rows.  bf16 inputs are encouraged
    (halves HBM traffic); accumulation is always f32.
    """
    n, c, h, w = inputs.shape
    rows = n * c
    L = h * w
    total = n * c * h * w

    x2 = inputs.reshape(rows, L)
    y2 = targets.reshape(rows, L)
    w_row = jnp.broadcast_to(jnp.asarray(weights, jnp.float32),
                             (1, 1, h, w)).reshape(1, L)

    # Tiny-row guard: keep the minimum 8-sublane block in-bounds; zero-padded
    # rows contribute exactly 0 to the weighted SSE.
    if rows < 8:
        x2 = jnp.pad(x2, ((0, 8 - rows), (0, 0)))
        y2 = jnp.pad(y2, ((0, 8 - rows), (0, 0)))
        rows = 8

    itemsize = jnp.dtype(x2.dtype).itemsize

    # ---- Generation-aware sizing -------------------------------------------
    try:
        vmem_cap = int(pltpu.get_tpu_info().vmem_capacity_bytes)
    except Exception:
        vmem_cap = 64 << 20                       # conservative (v7x-sized)
    vmem_budget = (vmem_cap * 3) // 4             # ~25% headroom

    if num_cores is None:
        # v7x-class chips (64 MiB VMEM) have 2 TensorCores; v5e/v6e have 1.
        num_cores = 2 if vmem_cap <= (80 << 20) else 1
    if target_block_bytes is None:
        target_block_bytes = (8 << 20) if vmem_cap >= (100 << 20) else (4 << 20)

    elems_target = max(1, target_block_bytes // itemsize)

    # ---- Lane tile (always a multiple of 128, or the full small-L extent) ---
    LANE_TILE_MAX = 64 * 1024                     # caps unrolled fold size
    if L <= 128:
        lane_tile = L
    else:
        bound = L if L % 128 == 0 else (L // 128) * 128
        bound = min(bound, LANE_TILE_MAX)
        lane_tile = min(bound, max(128, (elems_target // 8) // 128 * 128))
    lane_steps = -(-L // lane_tile)

    # ---- Row tile ------------------------------------------------------------
    rows8 = ((rows + 7) // 8) * 8
    if row_tile is None:
        rt = max(8, (elems_target // lane_tile) // 8 * 8)
    else:
        rt = max(8, (row_tile // 8) * 8)
    rt = min(rt, rows8)

    # ---- VMEM footprint (streams + f32 intermediates), shrink to fit --------
    def footprint(rt_, lt_):
        in_block = rt_ * lt_ * itemsize
        f32_block = rt_ * lt_ * 4
        return (2 * 2 * in_block          # x, y double-buffered
                + 2 * lt_ * 4             # weight row (double-buffered)
                + 3 * f32_block           # f32 upcast / diff / square temps
                + 2 * 8 * 128 * 4         # resident partial accumulator
                + (2 << 20))              # slack

    while footprint(rt, lane_tile) > vmem_budget and rt > 8:
        rt = max(8, (rt // 2) // 8 * 8)
    while footprint(rt, lane_tile) > vmem_budget and lane_tile > 128:
        lane_tile = max(128, (lane_tile // 2) // 128 * 128)
        lane_steps = -(-L // lane_tile)

    num_row_blocks = -(-rows // rt)
    p = num_cores if num_row_blocks >= num_cores else 1
    steps = -(-num_row_blocks // p)

    row_tail = (p * steps * rt != rows)
    lane_tail = (lane_steps * lane_tile != L)
    acc_cols = min(lane_tile, 128)

    kernel = functools.partial(_wrmse_kernel, rows=rows, cols=L, row_tile=rt,
                               lane_tile=lane_tile, row_tail=row_tail,
                               lane_tail=lane_tail)

    def xy_index(pi, l, j):
        # Clamp so out-of-range row blocks re-read the last valid block; their
        # contribution is masked to zero inside the kernel.
        return (jnp.minimum(pi * steps + j, num_row_blocks - 1), l)

    x_spec = pl.BlockSpec((rt, lane_tile), xy_index)
    w_spec = pl.BlockSpec((1, lane_tile), lambda pi, l, j: (0, l))
    out_spec = pl.BlockSpec((8, acc_cols), lambda pi, l, j: (pi, 0))

    vmem_limit = int(min(vmem_budget,
                         max(footprint(rt, lane_tile) + (4 << 20), 32 << 20)))

    cost = pl.CostEstimate(
        flops=4 * total,
        transcendentals=0,
        bytes_accessed=2 * total * itemsize + L * 4 + p * 8 * acc_cols * 4,
    )

    partials = pl.pallas_call(
        kernel,
        out_shape=jax.ShapeDtypeStruct((p * 8, acc_cols), jnp.float32),
        grid_spec=pltpu.PrefetchScalarGridSpec(
            num_scalar_prefetch=0,
            grid=(p, lane_steps, steps),
            in_specs=[x_spec, x_spec, w_spec],
            out_specs=out_spec,
        ),
        compiler_params=pltpu.CompilerParams(
            dimension_semantics=("parallel", "arbitrary", "arbitrary"),
            vmem_limit_bytes=vmem_limit,
        ),
        cost_estimate=cost,
    )(x2, y2, w_row)

    # Single cross-lane reduce + sqrt(mean) in glue (trivial scalar work).
    return jnp.sqrt(jnp.sum(partials) / total)


if __name__ == "__main__":
    def check(key, shape, dtype=jnp.float32, **kw):
        n, c, h, w = shape
        k1, k2 = jax.random.split(key)
        inputs = jax.random.normal(k1, shape, dtype=jnp.float32).astype(dtype)
        targets = jax.random.normal(k2, shape, dtype=jnp.float32).astype(dtype)
        # Deterministic latitude-style weights, (1, 1, H, 1), mean-normalized.
        lat = jnp.cos(jnp.linspace(-jnp.pi / 2 + 0.1, jnp.pi / 2 - 0.1, h))
        weights = (lat / jnp.mean(lat)).reshape(1, 1, h, 1).astype(jnp.float32)

        out = jax.block_until_ready(weighted_rmse(inputs, targets, weights, **kw))
        xf = inputs.astype(jnp.float32)
        yf = targets.astype(jnp.float32)
        ref = jnp.sqrt(jnp.mean((xf - yf) ** 2 * weights))
        np.testing.assert_allclose(np.asarray(out), np.asarray(ref),
                                   rtol=1e-5, atol=1e-6)

    keys = jax.random.split(jax.random.PRNGKey(0), 5)
    # Primary small case (matches the module's typical NCHW usage).
    check(keys[0], (2, 4, 16, 16))
    # Multi-block row reduction + optional 2-way parallel split + row tail.
    check(keys[1], (4, 9, 16, 16), row_tile=8)
    # Lane dim not a multiple of 128: 128-wide lane tiles + masked lane tail.
    check(keys[2], (2, 4, 10, 24), row_tile=8)
    # Forced lane tiling (small block budget) with a partial trailing lane block.
    check(keys[3], (2, 4, 48, 64), row_tile=8, target_block_bytes=64 * 1024)
    # bf16 streaming path (upcast in VMEM, f32 accumulation).
    check(keys[4], (2, 4, 16, 16), dtype=jnp.bfloat16)

    print("KERNEL_OK")
</pallas_src>

<mosaic_0001>
module attributes {stable_mosaic.version = 11 : i64} {
  func.func @_wrmse_kernel(%arg0: i32, %arg1: i32, %arg2: i32, %arg3: memref<8x256xf32, #tpu.memory_space<vmem>>, %arg4: memref<8x256xf32, #tpu.memory_space<vmem>>, %arg5: memref<1x256xf32, #tpu.memory_space<vmem>>, %arg6: memref<8x128xf32, #tpu.memory_space<vmem>>) attributes {dimension_semantics = [#tpu.dimension_semantics<parallel>, #tpu.dimension_semantics<arbitrary>, #tpu.dimension_semantics<arbitrary>], iteration_bounds = array<i64: 1, 1, 1>, scalar_prefetch = 0 : i64, scratch_operands = 0 : i64, tpu.core_type = #tpu.core_type<tc>, window_params = [{transform_indices = @transform_0, window_bounds = array<i64: 8, 256>}, {transform_indices = @transform_1, window_bounds = array<i64: 8, 256>}, {transform_indices = @transform_2, window_bounds = array<i64: 1, 256>}, {transform_indices = @transform_3, window_bounds = array<i64: 8, 128>}]} {
    %c0_i32 = arith.constant 0 : i32
    %0 = arith.cmpi eq, %arg1, %c0_i32 : i32
    %c0_i32_0 = arith.constant 0 : i32
    %1 = arith.cmpi eq, %arg2, %c0_i32_0 : i32
    %2 = arith.andi %0, %1 : i1
    %3 = arith.extui %2 : i1 to i32
    %c0_i32_1 = arith.constant 0 : i32
    %4 = arith.cmpi ne, %3, %c0_i32_1 : i32
    scf.if %4 {
      %cst_11 = arith.constant 0.000000e+00 : f32
      %20 = vector.broadcast %cst_11 : f32 to vector<8x128xf32>
      %c0_12 = arith.constant 0 : index
      %c0_13 = arith.constant 0 : index
      %21 = vector.load %arg6[%c0_12, %c0_13] : memref<8x128xf32, #tpu.memory_space<vmem>>, vector<8x128xf32>
      tpu.vector_store %arg6[%c0_12, %c0_13], %20 {strides = array<i32>} : memref<8x128xf32, #tpu.memory_space<vmem>>, vector<8x128xf32>,
    } else {
    }
    %c0 = arith.constant 0 : index
    %c0_2 = arith.constant 0 : index
    %5 = vector.load %arg3[%c0, %c0_2] : memref<8x256xf32, #tpu.memory_space<vmem>>, vector<8x256xf32>
    %c0_3 = arith.constant 0 : index
    %c0_4 = arith.constant 0 : index
    %6 = vector.load %arg4[%c0_3, %c0_4] : memref<8x256xf32, #tpu.memory_space<vmem>>, vector<8x256xf32>
    %7 = arith.subf %5, %6 : vector<8x256xf32>
    %8 = arith.mulf %7, %7 : vector<8x256xf32>
    %9 = vector.shape_cast %8 : vector<8x256xf32> to vector<1x8x256xf32>
    %cst = arith.constant dense<0.000000e+00> : vector<8x256xf32>
    %10 = vector.multi_reduction <add>, %9, %cst [0] : vector<1x8x256xf32> to vector<8x256xf32>
    %c0_5 = arith.constant 0 : index
    %c0_6 = arith.constant 0 : index
    %11 = vector.load %arg5[%c0_5, %c0_6] : memref<1x256xf32, #tpu.memory_space<vmem>>, vector<1x256xf32>
    %12 = vector.broadcast %11 : vector<1x256xf32> to vector<8x256xf32>
    %13 = arith.mulf %10, %12 : vector<8x256xf32>
    %c0_7 = arith.constant 0 : index
    %c0_8 = arith.constant 0 : index
    %14 = vector.load %arg6[%c0_7, %c0_8] : memref<8x128xf32, #tpu.memory_space<vmem>>, vector<8x128xf32>
    %15 = vector.extract_strided_slice %13 {offsets = [0, 0], sizes = [8, 128], strides = [1, 1]} : vector<8x256xf32> to vector<8x128xf32>
    %16 = vector.extract_strided_slice %13 {offsets = [0, 128], sizes = [8, 128], strides = [1, 1]} : vector<8x256xf32> to vector<8x128xf32>
    %17 = arith.addf %15, %16 : vector<8x128xf32>
    %18 = arith.addf %14, %17 : vector<8x128xf32>
    %c0_9 = arith.constant 0 : index
    %c0_10 = arith.constant 0 : index
    %19 = vector.load %arg6[%c0_9, %c0_10] : memref<8x128xf32, #tpu.memory_space<vmem>>, vector<8x128xf32>
    tpu.vector_store %arg6[%c0_9, %c0_10], %18 {strides = array<i32>} : memref<8x128xf32, #tpu.memory_space<vmem>>, vector<8x128xf32>,
    return
  }
  func.func @transform_0(%arg0: i32, %arg1: i32, %arg2: i32) -> (i32, i32) {
    %c1_i32 = arith.constant 1 : i32
    %0 = arith.muli %arg0, %c1_i32 : i32
    %1 = arith.addi %0, %arg2 : i32
    %c0_i32 = arith.constant 0 : i32
    %2 = arith.minsi %1, %c0_i32 : i32
    %c0_i32_0 = arith.constant 0 : i32
    return %2, %arg1 : i32, i32
  }
  func.func @transform_1(%arg0: i32, %arg1: i32, %arg2: i32) -> (i32, i32) {
    %c1_i32 = arith.constant 1 : i32
    %0 = arith.muli %arg0, %c1_i32 : i32
    %1 = arith.addi %0, %arg2 : i32
    %c0_i32 = arith.constant 0 : i32
    %2 = arith.minsi %1, %c0_i32 : i32
    %c0_i32_0 = arith.constant 0 : i32
    return %2, %arg1 : i32, i32
  }
  func.func @transform_2(%arg0: i32, %arg1: i32, %arg2: i32) -> (i32, i32) {
    %c0_i32 = arith.constant 0 : i32
    %c0_i32_0 = arith.constant 0 : i32
    return %c0_i32, %arg1 : i32, i32
  }
  func.func @transform_3(%arg0: i32, %arg1: i32, %arg2: i32) -> (i32, i32) {
    %c0_i32 = arith.constant 0 : i32
    %c0_i32_0 = arith.constant 0 : i32
    return %arg0, %c0_i32 : i32, i32
  }
}

</mosaic_0001>

<llo_original>
// kernel: tpu_custom_call.1
$region0: #{tpu_custom_call.1}
  #allocation0 [shape = 'u32[]', space=smem, size = 0x4, offset = 0x4, fixed_abs, tag = 'smem constant byte address 0x4 - core index']
  #allocation1 [shape = 'u32[144,128]{1,0:T(1,128)}', space=vmem, size = 0x12000, scoped, tag = 'internal scratch']
  %s0 = inlined_call_operand.hbm [shape: f32[8,256], index: 0, kind: input, shape index: {}]
  %s1 = inlined_call_operand.hbm [shape: f32[8,256], index: 1, kind: input, shape index: {}]
  %s2 = inlined_call_operand.vmem [shape: f32[1,256], index: 2, kind: input, shape index: {}]
  %s3 = inlined_call_operand.hbm [shape: f32[8,128], index: 3, kind: output, shape index: {}]
  %s4 = sld [smem:[#allocation0]]
  $region34: #{tpu_custom_call.1} parent=0
    _
  %s6 = ssub.s32 1, %s4
  %s7 = scalar_select 0, %s6, %s4
  $region1: #{tpu_custom_call.1} parent=0
    #allocation2 [shape = 'u8[8192]{0}', space=vmem, size = 0x2000, scoped, tag = 'input window, operand 0, single buffered']
    #allocation3 [shape = 's32[1]{0}', space=sflag, size = 0x4, scoped, tag = 'scoped memory for tpu_custom_call.1']
    #allocation4 [shape = 's32[1]{0}', space=sflag, size = 0x4, scoped, tag = 'scoped memory for tpu_custom_call.1']
    #allocation5 [shape = 'u8[8192]{0}', space=vmem, size = 0x2000, scoped, tag = 'input window, operand 1, single buffered']
    #allocation6 [shape = 's32[1]{0}', space=sflag, size = 0x4, scoped, tag = 'scoped memory for tpu_custom_call.1']
    #allocation7 [shape = 'u8[4096]{0}', space=vmem, size = 0x1000, scoped, tag = 'output window, operand 0, single buffered']
    %8 = vsyncpa [#allocation3], 0
    %9 = vsyncpa [#allocation6], 0
    %10 = vsyncpa [#allocation4], 0
    // Predicated region
    $region2: #{tpu_custom_call.1} parent=1 // pred_check
      _
    $region3: #{tpu_custom_call.1} parent=1 // pred_check_branch
      %12 = sbr.rel (0) target = $region5
    $region4: #{tpu_custom_call.1} parent=1 // pred_region
      %s13 = sadd.s32 0, 0
      %p14 = scmp.lt.s32.totalorder %s13, 0
      %s15 = scalar_select %p14, %s13, 0
      %s17 = ssub.s32 256, 256
      %18 = vsyncadd [#allocation3], %s17
      %s19 = smul.addr %s15, 2
      %s20 = smul.addr %s19, 128
      %s21 = scalar_lea.hbm %s0, %s20
      %s23 = sshll.u32 [#allocation2], 4
      %s24 = int_to_ptr.vmem [resolvable:$true] %s23
      %26 = dma.hbm_to_vmem [thread:$0]  %s21, 256, %s24, [#allocation3]
    $region5: #{tpu_custom_call.1} parent=1 // pred_fallthru
      _
    // Predicated region
    $region6: #{tpu_custom_call.1} parent=1 // pred_check
      _
    $region7: #{tpu_custom_call.1} parent=1 // pred_check_branch
      %28 = sbr.rel (0) target = $region9
    $region8: #{tpu_custom_call.1} parent=1 // pred_region
      %s29 = sadd.s32 0, 0
      %p30 = scmp.lt.s32.totalorder %s29, 0
      %s31 = scalar_select %p30, %s29, 0
      %s33 = ssub.s32 256, 256
      %34 = vsyncadd [#allocation6], %s33
      %s35 = smul.addr %s31, 2
      %s36 = smul.addr %s35, 128
      %s37 = scalar_lea.hbm %s1, %s36
      %s39 = sshll.u32 [#allocation5], 4
      %s40 = int_to_ptr.vmem [resolvable:$true] %s39
      %42 = dma.hbm_to_vmem [thread:$0]  %s37, 256, %s40, [#allocation6]
    $region9: #{tpu_custom_call.1} parent=1 // pred_fallthru
      _
    // Predicated region
    $region10: #{tpu_custom_call.1} parent=1 // pred_check
      _
    $region11: #{tpu_custom_call.1} parent=1 // pred_check_branch
      %44 = sbr.rel (0) target = $region13
    $region12: #{tpu_custom_call.1} parent=1 // pred_region
      _
    $region13: #{tpu_custom_call.1} parent=1 // pred_fallthru
      _
    // Predicated region
    $region14: #{tpu_custom_call.1} parent=1 // pred_check
      _
    $region15: #{tpu_custom_call.1} parent=1 // pred_check_branch
      %46 = sbr.rel (0) target = $region17
    $region16: #{tpu_custom_call.1} parent=1 // pred_region
      %47 = dma.done [#allocation3], 256
    $region17: #{tpu_custom_call.1} parent=1 // pred_fallthru
      _
    // Predicated region
    $region18: #{tpu_custom_call.1} parent=1 // pred_check
      _
    $region19: #{tpu_custom_call.1} parent=1 // pred_check_branch
      %49 = sbr.rel (0) target = $region21
    $region20: #{tpu_custom_call.1} parent=1 // pred_region
      %50 = dma.done [#allocation6], 256
    $region21: #{tpu_custom_call.1} parent=1 // pred_fallthru
      _
    %s51 = sadd.s32 0, 0
    %p52 = scmp.lt.s32.totalorder %s51, 0
    %s53 = scalar_select %p52, %s51, 0
    %s54 = sadd.s32 0, 0
    %p55 = scmp.lt.s32.totalorder %s54, 0
    %s56 = scalar_select %p55, %s54, 0
    %p57 = scmp.eq.s32.totalorder 0, 0
    %p58 = scmp.eq.s32.totalorder 0, 0
    %p59 = pnand %p57, %p58
    %p60 = pneg %p59
    // Predicated region
    $region22: #{tpu_custom_call.1} parent=1 // pred_check
      _
    $region23: #{tpu_custom_call.1} parent=1 // pred_check_branch
      %62 = sbr.rel (%p59) target = $region25
    $region24: #{tpu_custom_call.1} parent=1 // pred_region
      %63 = vst [vmem:[#allocation7] sm:$0xff] 0.0
    $region25: #{tpu_custom_call.1} parent=1 // pred_fallthru
      _
    %v64 = vld [vmem:[#allocation2] sm:$0xff]
    %v65 = vld [vmem:[#allocation2 + $0x8] sm:$0xff]
    %v66 = vld [vmem:[#allocation5] sm:$0xff]
    %v67 = vld [vmem:[#allocation5 + $0x8] sm:$0xff]
    %v68 = vsub.f32 %v64, %v66
    %v69 = vsub.f32 %v65, %v67
    %v70 = vmul.f32 %v68, %v68
    %v71 = vmul.f32 %v69, %v69
    %v72 = vadd.f32 %v70, 0.0
    %v73 = vadd.f32 %v71, 0.0
    %v74 = vld [vmem:[%s2] sm:$0x3]
    %v76 = vlaneseq
    %v77 = vshrl.u32 %v76, 7
    %v78 = vsub.s32 0, %v77
    %v79 = vrot.slane %v74, %v78
    %v80 = vlaneseq
    %v81 = vshrl.u32 %v80, 7
    %v82 = vsub.s32 1, %v81
    %v83 = vrot.slane %v74, %v82
    %v86 = vmul.f32 %v72, %v79
    %v87 = vmul.f32 %v73, %v83
    %v88 = vld [vmem:[#allocation7] sm:$0xff]
    %v89 = vadd.f32 %v86, %v87
    %v90 = vadd.f32 %v88, %v89
    %91 = vst [vmem:[#allocation7] sm:$0xff] %v90
    // Predicated region
    $region26: #{tpu_custom_call.1} parent=1 // pred_check
      _
    $region27: #{tpu_custom_call.1} parent=1 // pred_check_branch
      %93 = sbr.rel (0) target = $region29
    $region28: #{tpu_custom_call.1} parent=1 // pred_region
      %s95 = ssub.s32 128, 128
      %96 = vsyncadd [#allocation4], %s95
      %s98 = sshll.u32 [#allocation7], 4
      %s99 = int_to_ptr.vmem [resolvable:$true] %s98
      %101 = dma.vmem_to_hbm [thread:$0]  %s99, 128, %s3, [#allocation4]
    $region29: #{tpu_custom_call.1} parent=1 // pred_fallthru
      _
    // Predicated region
    $region30: #{tpu_custom_call.1} parent=1 // pred_check
      _
    $region31: #{tpu_custom_call.1} parent=1 // pred_check_branch
      %103 = sbr.rel (0) target = $region33
    $region32: #{tpu_custom_call.1} parent=1 // pred_region
      %104 = dma.done [#allocation4], 128
    $region33: #{tpu_custom_call.1} parent=1 // pred_fallthru
      _
    %105 = vsyncpa [#allocation3], 1
    %106 = vsyncpa [#allocation6], 1
    %107 = vsyncpa [#allocation4], 1

</llo_original>
